<compile_context>
chip_gen: v5e
topology: v5e:2x2
jax: 0.10.0
libtpu: 0.0.40
codegen_flags: <defaults>
</compile_context>

<pallas_src>
import math

import jax
import jax.numpy as jnp
from jax.experimental import pallas as pl
from jax.experimental.pallas import tpu as pltpu


def _round_up(x, m):
    return ((x + m - 1) // m) * m


def _vmem_capacity_bytes():
    """Per-core VMEM capacity; conservative 64 MiB (v7x) fallback if the query fails."""
    cap = 64 * 1024 * 1024
    try:
        info = pltpu.get_tpu_info()
        cap = int(getattr(info, "vmem_capacity_bytes", cap))
    except Exception:
        pass
    return cap


def _padded_tile_bytes(bt, d1, d2, dtype):
    """VMEM bytes of one (bt, d1, d2) buffer after (sublane, 128-lane) padding."""
    item = jnp.dtype(dtype).itemsize
    sub = {4: 8, 2: 16, 1: 32}.get(item, 8)
    return bt * _round_up(max(d1, 1), sub) * _round_up(max(d2, 1), 128) * item


def _working_set_bytes(bt, T, H, in_dtype, out_dtype):
    """Honest double-buffered VMEM footprint of one grid step (padded shapes)."""
    ws = 0
    ws += 2 * _padded_tile_bytes(bt, T, H, in_dtype)       # inputs tile
    ws += 2 * _padded_tile_bytes(bt, T, H, out_dtype)      # representations tile
    ws += 2 * _padded_tile_bytes(bt, T, 1, jnp.float32)    # mask tile (lane-padded to 128)
    ws += 2 * _padded_tile_bytes(bt, T, 1, out_dtype)      # attentions tile (lane-padded)
    ws += 2 * _padded_tile_bytes(1, 1, H, jnp.float32)     # attention vector (counted at 2 bufs)
    return ws


def _pick_batch_tile(B, T, H, in_dtype, out_dtype):
    """Divisor of B: fits the padded VMEM budget, >= 4 grid steps when possible,
    per-step input tile sized near the HBM-roofline knee."""
    cap = _vmem_capacity_bytes()
    vmem_limit = (cap * 3) // 4
    budget = (vmem_limit * 3) // 4                      # >= 25% headroom for compiler scratch
    target_hi = (4 << 20) if cap <= (64 << 20) else (8 << 20)

    divisors = [d for d in range(1, B + 1) if B % d == 0]
    fits = [d for d in divisors
            if _working_set_bytes(d, T, H, in_dtype, out_dtype) <= budget]
    if not fits:
        return 1, vmem_limit
    # Prefer >= 4 grid steps (pipelining + v7x megacore sharding).
    pref = [d for d in fits if B // d >= 4] or fits
    in_item = jnp.dtype(in_dtype).itemsize
    under = [d for d in pref if d * T * H * in_item <= target_hi]
    bt = max(under) if under else min(pref)
    return bt, vmem_limit


def _attention_kernel(x_ref, m_ref, v_ref, rep_ref, att_ref):
    # x:   (bt, T, H)  input block, caller dtype
    # m:   (bt, T, 1)  mask block, f32
    # v:   (1, H)      attention vector (resident), f32
    x = x_ref[...].astype(jnp.float32)
    msk = m_ref[...]
    v = v_ref[...]

    # H-reduction on the VPU/XLU lane path (keepdims => no reshape/relayout).
    logits = jnp.sum(x * v, axis=-1, keepdims=True)               # (bt, T, 1)

    # Per-sequence max: any per-sequence-constant offset cancels exactly in the
    # normalisation, so this matches the reference's *global* max up to rounding.
    mx = jnp.max(logits, axis=1, keepdims=True)                   # (bt, 1, 1)
    unnorm = jnp.exp(logits - mx)                                 # (bt, T, 1)
    masked = unnorm * msk                                         # (bt, T, 1)

    # Per-sequence sum over timesteps (sublane reduce), broadcast back over T.
    sums = jnp.sum(masked, axis=1, keepdims=True)                 # (bt, 1, 1)
    # approx=False: exact divide (approx=True EUP recip exceeds the 1e-5 tolerance).
    inv = pl.reciprocal(sums, approx=False)                       # (bt, 1, 1)
    att = masked * inv                                            # (bt, T, 1)

    att_ref[...] = att.astype(att_ref.dtype)
    rep_ref[...] = (x * att).astype(rep_ref.dtype)                # (bt, T, H)


def attention_forward(inputs, attention_vector, mask, *, batch_tile=None):
    """inputs: (B, T, H); attention_vector: (H,); mask: (B, T).

    Returns (representations (B, T, H), attentions (B, T)), both in inputs.dtype.
    """
    B, T, H = inputs.shape
    out_dtype = inputs.dtype

    auto_bt, vmem_limit = _pick_batch_tile(B, T, H, inputs.dtype, out_dtype)
    bt = batch_tile if batch_tile is not None else auto_bt
    assert B % bt == 0, "batch_tile must divide the batch size"

    # Free wrapper-side views (no HBM copies of the big tensor).
    m3 = mask.astype(jnp.float32).reshape(B, T, 1)
    v2 = attention_vector.astype(jnp.float32).reshape(1, H)

    grid = (B // bt,)

    rep, att3 = pl.pallas_call(
        _attention_kernel,
        out_shape=(
            jax.ShapeDtypeStruct((B, T, H), out_dtype),
            jax.ShapeDtypeStruct((B, T, 1), out_dtype),
        ),
        grid_spec=pltpu.PrefetchScalarGridSpec(
            num_scalar_prefetch=0,
            grid=grid,
            in_specs=[
                pl.BlockSpec((bt, T, H), lambda i: (i, 0, 0)),   # inputs
                pl.BlockSpec((bt, T, 1), lambda i: (i, 0, 0)),   # mask
                pl.BlockSpec((1, H), lambda i: (0, 0)),          # attention vector (resident)
            ],
            out_specs=(
                pl.BlockSpec((bt, T, H), lambda i: (i, 0, 0)),   # representations
                pl.BlockSpec((bt, T, 1), lambda i: (i, 0, 0)),   # attentions
            ),
        ),
        compiler_params=pltpu.CompilerParams(
            dimension_semantics=("parallel",),
            vmem_limit_bytes=int(vmem_limit),
        ),
    )(inputs, m3, v2)

    return rep, att3.reshape(B, T)


def reference_forward(inputs, attention_vector, mask):
    """Pure-JAX mirror of the PyTorch module (global max, true division)."""
    logits = jnp.einsum("bth,h->bt", inputs, attention_vector)
    unnorm = jnp.exp(logits - jnp.max(logits))
    masked = unnorm * mask
    att_sums = jnp.sum(masked, axis=1, keepdims=True)
    attentions = masked / att_sums
    representations = inputs * attentions[:, :, None]
    return representations, attentions


if __name__ == "__main__":
    B, T, H = 8, 8, 32  # batch, timesteps, attention_size

    key = jax.random.PRNGKey(0)
    k_in, k_w = jax.random.split(key)

    inputs = jax.random.normal(k_in, (B, T, H), dtype=jnp.float32)

    # Parameter init: uniform(-stdv, stdv), stdv = 1/sqrt(attention_size).
    stdv = 1.0 / math.sqrt(H)
    attention_vector = jax.random.uniform(
        k_w, (H,), minval=-stdv, maxval=stdv, dtype=jnp.float32)

    # Mask from sequence lengths (return_attention=True semantics: both outputs).
    lengths = jnp.array([8, 5, 8, 3, 6, 1, 7, 4], dtype=jnp.int32)
    mask = (jnp.arange(T)[None, :] < lengths[:, None]).astype(jnp.float32)

    rep_expected, att_expected = reference_forward(inputs, attention_vector, mask)

    # Explicit multi-step pipelined grid (batch_tile=2 -> grid=(4,)).
    rep, att = attention_forward(inputs, attention_vector, mask, batch_tile=2)
    rep = jax.block_until_ready(rep)
    att = jax.block_until_ready(att)
    assert rep.shape == (B, T, H) and att.shape == (B, T)
    assert jnp.allclose(rep, rep_expected, atol=1e-5, rtol=1e-5)
    assert jnp.allclose(att, att_expected, atol=1e-5, rtol=1e-5)

    # Auto-sized batch tile (VMEM-budgeted, >= 4 grid steps when possible).
    rep2, att2 = attention_forward(inputs, attention_vector, mask)
    rep2 = jax.block_until_ready(rep2)
    att2 = jax.block_until_ready(att2)
    assert jnp.allclose(rep2, rep_expected, atol=1e-5, rtol=1e-5)
    assert jnp.allclose(att2, att_expected, atol=1e-5, rtol=1e-5)

    # Narrow-dtype I/O path (bf16 in -> bf16 out; kernel computes in f32).
    inputs_bf16 = inputs.astype(jnp.bfloat16)
    rep_b_expected, att_b_expected = reference_forward(
        inputs_bf16.astype(jnp.float32), attention_vector, mask)
    rep_b, att_b = attention_forward(inputs_bf16, attention_vector, mask)
    rep_b = jax.block_until_ready(rep_b)
    att_b = jax.block_until_ready(att_b)
    assert rep_b.dtype == jnp.bfloat16 and att_b.dtype == jnp.bfloat16
    assert jnp.allclose(rep_b.astype(jnp.float32), rep_b_expected, atol=2e-2, rtol=2e-2)
    assert jnp.allclose(att_b.astype(jnp.float32), att_b_expected, atol=2e-2, rtol=2e-2)

    print("KERNEL_OK")
</pallas_src>

<mosaic_0001>
module attributes {stable_mosaic.version = 11 : i64} {
  func.func @_attention_kernel(%arg0: i32, %arg1: memref<2x8x32xf32, #tpu.memory_space<vmem>>, %arg2: memref<2x8x1xf32, #tpu.memory_space<vmem>>, %arg3: memref<1x32xf32, #tpu.memory_space<vmem>>, %arg4: memref<2x8x32xf32, #tpu.memory_space<vmem>>, %arg5: memref<2x8x1xf32, #tpu.memory_space<vmem>>) attributes {dimension_semantics = [#tpu.dimension_semantics<parallel>], iteration_bounds = array<i64: 4>, scalar_prefetch = 0 : i64, scratch_operands = 0 : i64, tpu.core_type = #tpu.core_type<tc>, window_params = [{transform_indices = @transform_0, window_bounds = array<i64: 2, 8, 32>}, {transform_indices = @transform_1, window_bounds = array<i64: 2, 8, 1>}, {pipeline_mode = #tpu.pipeline_mode<synchronous>, transform_indices = @transform_2, window_bounds = array<i64: 1, 32>}, {transform_indices = @transform_3, window_bounds = array<i64: 2, 8, 32>}, {transform_indices = @transform_4, window_bounds = array<i64: 2, 8, 1>}]} {
    %c0 = arith.constant 0 : index
    %c0_0 = arith.constant 0 : index
    %c0_1 = arith.constant 0 : index
    %0 = vector.load %arg1[%c0, %c0_0, %c0_1] : memref<2x8x32xf32, #tpu.memory_space<vmem>>, vector<2x8x32xf32>
    %c0_2 = arith.constant 0 : index
    %c0_3 = arith.constant 0 : index
    %c0_4 = arith.constant 0 : index
    %1 = vector.load %arg2[%c0_2, %c0_3, %c0_4] : memref<2x8x1xf32, #tpu.memory_space<vmem>>, vector<2x8x1xf32>
    %c0_5 = arith.constant 0 : index
    %c0_6 = arith.constant 0 : index
    %2 = vector.load %arg3[%c0_5, %c0_6] : memref<1x32xf32, #tpu.memory_space<vmem>>, vector<1x32xf32>
    %3 = vector.shape_cast %2 : vector<1x32xf32> to vector<1x1x32xf32>
    %4 = vector.broadcast %3 : vector<1x1x32xf32> to vector<2x8x32xf32>
    %5 = arith.mulf %0, %4 : vector<2x8x32xf32>
    %cst = arith.constant dense<0.000000e+00> : vector<2x8xf32>
    %6 = vector.multi_reduction <add>, %5, %cst [2] : vector<2x8x32xf32> to vector<2x8xf32>
    %7 = vector.shape_cast %6 : vector<2x8xf32> to vector<2x8x1xf32>
    %cst_7 = arith.constant dense<0xFF800000> : vector<2x1xf32>
    %8 = vector.multi_reduction <maximumf>, %7, %cst_7 [1] : vector<2x8x1xf32> to vector<2x1xf32>
    %9 = vector.shape_cast %8 : vector<2x1xf32> to vector<2x1x1xf32>
    %10 = vector.broadcast %9 : vector<2x1x1xf32> to vector<2x8x1xf32>
    %11 = arith.subf %7, %10 : vector<2x8x1xf32>
    %12 = math.exp %11 : vector<2x8x1xf32>
    %13 = arith.mulf %12, %1 : vector<2x8x1xf32>
    %cst_8 = arith.constant dense<0.000000e+00> : vector<2x1xf32>
    %14 = vector.multi_reduction <add>, %13, %cst_8 [1] : vector<2x8x1xf32> to vector<2x1xf32>
    %15 = vector.shape_cast %14 : vector<2x1xf32> to vector<2x1x1xf32>
    %16 = tpu.reciprocal %15 : vector<2x1x1xf32> -> vector<2x1x1xf32>
    %17 = vector.broadcast %16 : vector<2x1x1xf32> to vector<2x8x1xf32>
    %18 = arith.mulf %13, %17 : vector<2x8x1xf32>
    %c0_9 = arith.constant 0 : index
    %c0_10 = arith.constant 0 : index
    %c0_11 = arith.constant 0 : index
    %19 = vector.load %arg5[%c0_9, %c0_10, %c0_11] : memref<2x8x1xf32, #tpu.memory_space<vmem>>, vector<2x8x1xf32>
    tpu.vector_store %arg5[%c0_9, %c0_10, %c0_11], %18 {strides = array<i32>} : memref<2x8x1xf32, #tpu.memory_space<vmem>>, vector<2x8x1xf32>,
    %20 = vector.broadcast %18 : vector<2x8x1xf32> to vector<2x8x32xf32>
    %21 = arith.mulf %0, %20 : vector<2x8x32xf32>
    %c0_12 = arith.constant 0 : index
    %c0_13 = arith.constant 0 : index
    %c0_14 = arith.constant 0 : index
    %22 = vector.load %arg4[%c0_12, %c0_13, %c0_14] : memref<2x8x32xf32, #tpu.memory_space<vmem>>, vector<2x8x32xf32>
    tpu.vector_store %arg4[%c0_12, %c0_13, %c0_14], %21 {strides = array<i32>} : memref<2x8x32xf32, #tpu.memory_space<vmem>>, vector<2x8x32xf32>,
    return
  }
  func.func @transform_0(%arg0: i32) -> (i32, i32, i32) {
    %c0_i32 = arith.constant 0 : i32
    %c0_i32_0 = arith.constant 0 : i32
    %c0_i32_1 = arith.constant 0 : i32
    return %arg0, %c0_i32, %c0_i32_0 : i32, i32, i32
  }
  func.func @transform_1(%arg0: i32) -> (i32, i32, i32) {
    %c0_i32 = arith.constant 0 : i32
    %c0_i32_0 = arith.constant 0 : i32
    %c0_i32_1 = arith.constant 0 : i32
    return %arg0, %c0_i32, %c0_i32_0 : i32, i32, i32
  }
  func.func @transform_2(%arg0: i32) -> (i32, i32) {
    %c0_i32 = arith.constant 0 : i32
    %c0_i32_0 = arith.constant 0 : i32
    %c0_i32_1 = arith.constant 0 : i32
    return %c0_i32, %c0_i32_0 : i32, i32
  }
  func.func @transform_3(%arg0: i32) -> (i32, i32, i32) {
    %c0_i32 = arith.constant 0 : i32
    %c0_i32_0 = arith.constant 0 : i32
    %c0_i32_1 = arith.constant 0 : i32
    return %arg0, %c0_i32, %c0_i32_0 : i32, i32, i32
  }
  func.func @transform_4(%arg0: i32) -> (i32, i32, i32) {
    %c0_i32 = arith.constant 0 : i32
    %c0_i32_0 = arith.constant 0 : i32
    %c0_i32_1 = arith.constant 0 : i32
    return %arg0, %c0_i32, %c0_i32_0 : i32, i32, i32
  }
}

</mosaic_0001>

<llo_original>
// kernel: tpu_custom_call.1
$region0: #{tpu_custom_call.1}
  #allocation0 [shape = 'u32[]', space=smem, size = 0x4, offset = 0x4, fixed_abs, tag = 'smem constant byte address 0x4 - core index']
  #allocation1 [shape = 'u32[72,128]{1,0:T(1,128)}', space=vmem, size = 0x9000, scoped, tag = 'internal scratch']
  %s0 = inlined_call_operand.vmem [shape: f32[8,8,32], index: 0, kind: input, shape index: {}]
  %s1 = inlined_call_operand.vmem [shape: f32[8,8,1], index: 1, kind: input, shape index: {}]
  %s2 = inlined_call_operand.vmem [shape: f32[1,32], index: 2, kind: input, shape index: {}]
  %s3 = inlined_call_operand.hbm [shape: f32[8,8,32], index: 3, kind: output, shape index: {0}]
  %s4 = inlined_call_operand.vmem [shape: f32[8,8,1], index: 4, kind: output, shape index: {1}]
  %5 = xla_tuple %s3, %s4
  %s6 = sld [smem:[#allocation0]]
  $region53: #{tpu_custom_call.1} parent=0
    _
  %s8 = ssub.s32 1, %s6
  %s9 = scalar_select 0, %s8, %s6
  $region1: #{tpu_custom_call.1} parent=0
    #allocation2 [shape = 'u8[16384]{0}', space=vmem, size = 0x4000, scoped, tag = 'output window, operand 0']
    #allocation3 [shape = 's32[2]{0}', space=sflag, size = 0x8, scoped, tag = 'scoped memory for tpu_custom_call.1']
    %10 = vsyncpa [#allocation3], 0
    %s11 = scalar_lea.sflag [#allocation3], 1
    %12 = vsyncpa %s11, 0
    loop: start=0, step=1, limit=6
    $region2: #{tpu_custom_call.1} parent=1 // loop_pre_header
      _
    $region3: #{tpu_custom_call.1} parent=1 // loop_header
      %s14 = sphi 0, %s18
      %p15 = scmp.ge.s32.totalorder %s14, 6
      %s24 = sphi 0, %s26
      %s27 = sphi 0, %s24
      %s28 = sphi 0, %s27
      %s44 = sphi 0, %s28
      %s50 = sphi 0, %s52
      %s53 = sphi 0, %s50
      %s54 = sphi 0, %s53
      %s70 = sphi 0, %s54
      %s74 = sphi 0, %s74
      %s76 = sphi 0, %s74
      %s77 = sphi 0, %s76
      %s91 = sphi 0, %s77
      %s97 = sphi 0, %s99
      %s100 = sphi 0, %s97
      %s101 = sphi 0, %s100
      %s117 = sphi 0, %s101
      %s123 = sphi 0, %s125
      %s126 = sphi 0, %s123
      %s127 = sphi 0, %s126
      %s143 = sphi 0, %s127
    $region4: #{tpu_custom_call.1} parent=1 // loop_header_branch
      %17 = sbr.rel (%p15) target = $region8
    $region5: #{tpu_custom_call.1} parent=1 // loop_body
      %s19 = ssub.s32 %s14, 1
      %s20 = ssub.s32 %s14, 2
      %s21 = sadd.s32 %s14, 1
      %s22 = ssub.s32 %s14, %s21
      %p23 = scmp.eq.s32.totalorder %s22, 0
      %s25 = sadd.s32 %s24, 1
      %s26 = scalar_select %p23, %s24, %s25
      %p29 = pneg %p23
      %p30 = scmp.eq.s32.totalorder %s14, 3
      %p31 = por %p29, %p30
      %p32 = scmp.ne.s32.totalorder %s24, %s27
      %p33 = scmp.eq.s32.totalorder %s14, 0
      %p34 = por %p32, %p33
      %p35 = scmp.ne.s32.totalorder %s24, %s27
      %p36 = scmp.eq.s32.totalorder %s19, 3
      %p37 = por %p35, %p36
      %p38 = scmp.ne.s32.totalorder %s27, %s28
      %p39 = scmp.eq.s32.totalorder %s19, 0
      %p40 = por %p38, %p39
      %p41 = scmp.ne.s32.totalorder %s27, %s28
      %p42 = scmp.eq.s32.totalorder %s20, 3
      %p43 = por %p41, %p42
      %p45 = scmp.ne.s32.totalorder %s28, %s44
      %p46 = scmp.eq.s32.totalorder %s20, 0
      %p47 = por %p45, %p46
      %s48 = ssub.s32 %s14, %s21
      %p49 = scmp.eq.s32.totalorder %s48, 0
      %s51 = sadd.s32 %s50, 1
      %s52 = scalar_select %p49, %s50, %s51
      %p55 = pneg %p49
      %p56 = scmp.eq.s32.totalorder %s14, 3
      %p57 = por %p55, %p56
      %p58 = scmp.ne.s32.totalorder %s50, %s53
      %p59 = scmp.eq.s32.totalorder %s14, 0
      %p60 = por %p58, %p59
      %p61 = scmp.ne.s32.totalorder %s50, %s53
      %p62 = scmp.eq.s32.totalorder %s19, 3
      %p63 = por %p61, %p62
      %p64 = scmp.ne.s32.totalorder %s53, %s54
      %p65 = scmp.eq.s32.totalorder %s19, 0
      %p66 = por %p64, %p65
      %p67 = scmp.ne.s32.totalorder %s53, %s54
      %p68 = scmp.eq.s32.totalorder %s20, 3
      %p69 = por %p67, %p68
      %p71 = scmp.ne.s32.totalorder %s54, %s70
      %p72 = scmp.eq.s32.totalorder %s20, 0
      %p73 = por %p71, %p72
      %s75 = sadd.s32 %s74, 1
      %p78 = scmp.eq.s32.totalorder %s14, 3
      %p79 = scmp.ne.s32.totalorder %s74, %s76
      %p80 = scmp.eq.s32.totalorder %s14, 0
      %p81 = por %p79, %p80
      %p82 = scmp.ne.s32.totalorder %s74, %s76
      %p83 = scmp.eq.s32.totalorder %s19, 3
      %p84 = por %p82, %p83
      %p85 = scmp.ne.s32.totalorder %s76, %s77
      %p86 = scmp.eq.s32.totalorder %s19, 0
      %p87 = por %p85, %p86
      %p88 = scmp.ne.s32.totalorder %s76, %s77
      %p89 = scmp.eq.s32.totalorder %s20, 3
      %p90 = por %p88, %p89
      %p92 = scmp.ne.s32.totalorder %s77, %s91
      %p93 = scmp.eq.s32.totalorder %s20, 0
      %p94 = por %p92, %p93
      %s95 = ssub.s32 %s14, %s21
      %p96 = scmp.eq.s32.totalorder %s95, 0
      %s98 = sadd.s32 %s97, 1
      %s99 = scalar_select %p96, %s97, %s98
      %p102 = pneg %p96
      %p103 = scmp.eq.s32.totalorder %s14, 3
      %p104 = por %p102, %p103
      %p105 = scmp.ne.s32.totalorder %s97, %s100
      %p106 = scmp.eq.s32.totalorder %s14, 0
      %p107 = por %p105, %p106
      %p108 = scmp.ne.s32.totalorder %s97, %s100
      %p109 = scmp.eq.s32.totalorder %s19, 3
      %p110 = por %p108, %p109
      %p111 = scmp.ne.s32.totalorder %s100, %s101
      %p112 = scmp.eq.s32.totalorder %s19, 0
      %p113 = por %p111, %p112
      %p114 = scmp.ne.s32.totalorder %s100, %s101
      %p115 = scmp.eq.s32.totalorder %s20, 3
      %p116 = por %p114, %p115
      %p118 = scmp.ne.s32.totalorder %s101, %s117
      %p119 = scmp.eq.s32.totalorder %s20, 0
      %p120 = por %p118, %p119
      %s121 = ssub.s32 %s14, %s21
      %p122 = scmp.eq.s32.totalorder %s121, 0
      %s124 = sadd.s32 %s123, 1
      %s125 = scalar_select %p122, %s123, %s124
      %p128 = pneg %p122
      %p129 = scmp.eq.s32.totalorder %s14, 3
      %p130 = por %p128, %p129
      %p131 = scmp.ne.s32.totalorder %s123, %s126
      %p132 = scmp.eq.s32.totalorder %s14, 0
      %p133 = por %p131, %p132
      %p134 = scmp.ne.s32.totalorder %s123, %s126
      %p135 = scmp.eq.s32.totalorder %s19, 3
      %p136 = por %p134, %p135
      %p137 = scmp.ne.s32.totalorder %s126, %s127
      %p138 = scmp.eq.s32.totalorder %s19, 0
      %p139 = por %p137, %p138
      %p140 = scmp.ne.s32.totalorder %s126, %s127
      %p141 = scmp.eq.s32.totalorder %s20, 3
      %p142 = por %p140, %p141
      %p144 = scmp.ne.s32.totalorder %s127, %s143
      %p145 = scmp.eq.s32.totalorder %s20, 0
      %p146 = por %p144, %p145
      %p147 = scmp.le.s32.totalorder 1, %s14
      %p148 = scmp.lt.s32.totalorder %s14, 5
      %p149 = pnand %p147, %p148
      %p150 = pneg %p149
      // Predicated region
      $region9: #{tpu_custom_call.1} parent=5 // pred_check
        _
      $region10: #{tpu_custom_call.1} parent=5 // pred_check_branch
        %152 = sbr.rel (%p149) target = $region12
      $region11: #{tpu_custom_call.1} parent=5 // pred_region
        %s153 = ssub.s32 %s14, 1
        // Predicated region
        $region13: #{tpu_custom_call.1} parent=11 // pred_check
          %p154 = pneg %p87
        $region14: #{tpu_custom_call.1} parent=11 // pred_check_branch
          %156 = sbr.rel (%p154) target = $region16
        $region15: #{tpu_custom_call.1} parent=11 // pred_region
          _
        $region16: #{tpu_custom_call.1} parent=11 // pred_fallthru
          _
      $region12: #{tpu_custom_call.1} parent=5 // pred_fallthru
        _
      %p157 = scmp.lt.s32.totalorder %s14, 4
      // Predicated region
      $region17: #{tpu_custom_call.1} parent=5 // pred_check
        %p158 = pneg %p157
      $region18: #{tpu_custom_call.1} parent=5 // pred_check_branch
        %160 = sbr.rel (%p158) target = $region20
      $region19: #{tpu_custom_call.1} parent=5 // pred_region
        // Predicated region
        $region21: #{tpu_custom_call.1} parent=19 // pred_check
          %p161 = pneg %p34
        $region22: #{tpu_custom_call.1} parent=19 // pred_check_branch
          %163 = sbr.rel (%p161) target = $region24
        $region23: #{tpu_custom_call.1} parent=19 // pred_region
          %s164 = smul.u32 2, %s14
          %p165 = scmp.lt.s32.totalorder %s164, 7
          %s166 = scalar_select %p165, %s164, 7
          %s167 = smul.addr %s166, 8
          %s168 = scalar_lea.vmem %s0, %s167
          %s169 = smul.u32 2, %s14
        $region24: #{tpu_custom_call.1} parent=19 // pred_fallthru
          _
        // Predicated region
        $region25: #{tpu_custom_call.1} parent=19 // pred_check
          %p170 = pneg %p60
        $region26: #{tpu_custom_call.1} parent=19 // pred_check_branch
          %172 = sbr.rel (%p170) target = $region28
        $region27: #{tpu_custom_call.1} parent=19 // pred_region
          %s173 = smul.u32 2, %s14
          %p174 = scmp.lt.s32.totalorder %s173, 7
          %s175 = scalar_select %p174, %s173, 7
          %s176 = smul.addr %s175, 8
          %s177 = scalar_lea.vmem %s1, %s176
          %s178 = smul.u32 2, %s14
        $region28: #{tpu_custom_call.1} parent=19 // pred_fallthru
          _
      $region20: #{tpu_custom_call.1} parent=5 // pred_fallthru
        _
      %p179 = scmp.le.s32.totalorder 1, %s14
      %p180 = scmp.lt.s32.totalorder %s14, 5
      %p181 = pnand %p179, %p180
      %p182 = pneg %p181
      // Predicated region
      $region29: #{tpu_custom_call.1} parent=5 // pred_check
        _
      $region30: #{tpu_custom_call.1} parent=5 // pred_check_branch
        %184 = sbr.rel (%p181) target = $region32
      $region31: #{tpu_custom_call.1} parent=5 // pred_region
        %s185 = ssub.s32 %s14, 1
        %s186 = smul.u32 2, %s19
        %p187 = scmp.lt.s32.totalorder %s186, 7
        %s188 = scalar_select %p187, %s186, 7
        %s189 = smul.addr %s188, 8
        %s190 = scalar_lea.vmem %s0, %s189
        %p191 = pneg %p40
        %p192 = pneg %p37
        %s193 = smul.u32 2, %s19
        %p194 = scmp.lt.s32.totalorder %s193, 7
        %s195 = scalar_select %p194, %s193, 7
        %s196 = smul.addr %s195, 8
        %s197 = scalar_lea.vmem %s1, %s196
        %p198 = pneg %p66
        %p199 = pneg %p63
        %p200 = pneg %p87
        %p201 = pneg %p84
        %p202 = pneg %p113
        %p203 = pneg %p110
        %s204 = sand.u32 %s100, 1
        %s205 = scalar_lea.sflag [#allocation3], %s204
        %s206 = sand.u32 %s100, 1
        %s207 = smul.addr %s206, 16
        %s208 = scalar_lea.vmem [#allocation2], %s207
        %p209 = pneg %p139
        %p210 = pneg %p136
        %s211 = smul.u32 2, %s19
        %p212 = scmp.lt.s32.totalorder %s211, 7
        %s213 = scalar_select %p212, %s211, 7
        %s214 = smul.addr %s213, 8
        %s215 = scalar_lea.vmem %s4, %s214
        %s216 = smul.u32 2, %s19
        %p217 = scmp.lt.s32.totalorder %s216, 7
        %s218 = scalar_select %p217, %s216, 7
        %s219 = smul.addr %s218, 8
        %s220 = scalar_lea.vmem %s0, %s219
        %s221 = smul.u32 2, %s19
        %s222 = smul.u32 2, %s19
        %p223 = scmp.lt.s32.totalorder %s222, 7
        %s224 = scalar_select %p223, %s222, 7
        %s225 = smul.addr %s224, 8
        %s226 = scalar_lea.vmem %s1, %s225
        %s227 = smul.u32 2, %s19
        %s228 = smul.u32 2, %s19
        %s229 = smul.u32 2, %s19
        %p230 = scmp.lt.s32.totalorder %s229, 7
        %s231 = scalar_select %p230, %s229, 7
        %s232 = smul.addr %s231, 8
        %s233 = scalar_lea.vmem %s4, %s232
        %s234 = smul.u32 2, %s19
        %v235 = vld [vmem:[%s220] sm:$0xff]
        %v236 = vld [vmem:[%s220 + $0x8] sm:$0xff]
        %v237 = vld [vmem:[%s226] sm:$0xff]
        %v238 = vld [vmem:[%s226 + $0x8] sm:$0xff]
        %v239 = vld [vmem:[%s2] sm:$0x1]
        %v241 = vperm.slane %v239, 0
        %v243 = vmul.f32 %v235, %v241
        %v244 = vmul.f32 %v236, %v241
        %vm245 = vcmask 261120
        %v246 = vsel %vm245, %v243, 0.0
        %247 = vadd.xlane.f32.xlu0 %v246
        %v248 = vpop.xlane.xlu0 %247
        %v249 = vsel %vm245, %v244, 0.0
        %250 = vadd.xlane.f32.xlu0 %v249
        %v251 = vpop.xlane.xlu0 %250
        %v252 = vrot.slane %v248, 4
        %v253 = vmax.f32 %v248, %v252
        %v254 = vrot.slane %v253, 2
        %v255 = vmax.f32 %v253, %v254
        %v256 = vrot.slane %v255, 1
        %v257 = vmax.f32 %v255, %v256
        %v258 = vrot.slane %v251, 4
        %v259 = vmax.f32 %v251, %v258
        %v260 = vrot.slane %v259, 2
        %v261 = vmax.f32 %v259, %v260
        %v262 = vrot.slane %v261, 1
        %v263 = vmax.f32 %v261, %v262
        %v264 = vsub.f32 %v248, %v257
        %v265 = vsub.f32 %v251, %v263
        %v266 = vmul.f32 %v264, 1.442695
        %v267 = vpow.pop %v266
        %v268 = vmul.f32 %v265, 1.442695
        %v269 = vpow.pop %v268
        %v270 = vmul.f32 %v267, %v237
        %v271 = vmul.f32 %v269, %v238
        %vm272 = vcmask 7168
        %v273 = vsel %vm272, %v270, 0.0
        %v274 = vrot.slane %v273, 4
        %v275 = vadd.f32 %v273, %v274
        %v276 = vrot.slane %v275, 2
        %v277 = vadd.f32 %v275, %v276
        %v278 = vrot.slane %v277, 1
        %v279 = vadd.f32 %v277, %v278
        %v280 = vsel %vm272, %v271, 0.0
        %v281 = vrot.slane %v280, 4
        %v282 = vadd.f32 %v280, %v281
        %v283 = vrot.slane %v282, 2
        %v284 = vadd.f32 %v282, %v283
        %v285 = vrot.slane %v284, 1
        %v286 = vadd.f32 %v284, %v285
        %v287 = vrcp.pop %v279
        %v288 = vmul.f32 %v279, %v287
        %v289 = vsub.f32 1.0, %v288
        %v290 = vmul.f32 %v287, %v289
        %v291 = vadd.f32 %v287, %v290
        %vm292 = vweird.f32 %v279
        %vm293 = vweird.f32 %v287
        %vm294 = vmor %vm292, %vm293
        %v295 = vsel %vm294, %v287, %v291
        %v296 = vand.u32 2147483647, %v279
        %vm297 = vcmp.eq.f32.partialorder %v296, 8.507059e+37
        %v298 = vand.u32 %v279, 2147483648
        %v299 = vor.u32 1.1754944e-38, %v298
        %v300 = vsel %vm297, %v299, %v295
        %v301 = vrcp.pop %v286
        %v302 = vmul.f32 %v286, %v301
        %v303 = vsub.f32 1.0, %v302
        %v304 = vmul.f32 %v301, %v303
        %v305 = vadd.f32 %v301, %v304
        %vm306 = vweird.f32 %v286
        %vm307 = vweird.f32 %v301
        %vm308 = vmor %vm306, %vm307
        %v309 = vsel %vm308, %v301, %v305
        %v310 = vand.u32 2147483647, %v286
        %vm311 = vcmp.eq.f32.partialorder %v310, 8.507059e+37
        %v312 = vand.u32 %v286, 2147483648
        %v313 = vor.u32 1.1754944e-38, %v312
        %v314 = vsel %vm311, %v313, %v309
        %v315 = vmul.f32 %v270, %v300
        %v316 = vmul.f32 %v271, %v314
        %317 = vst.msk [vmem:[%s233] sm:$0xff] %vm272, %v315
        %318 = vst.msk [vmem:[%s233 + $0x8] sm:$0xff] %vm272, %v316
        %320 = vset.pattern.permute.xlu0 0
        %321 = vperm.xlu0 %320, %v315
        %v322 = vpop.permute.xlu0 %321
        %325 = vset.pattern.permute.xlu0 0
        %326 = vperm.xlu0 %325, %v316
        %v327 = vpop.permute.xlu0 %326
        %v329 = vmul.f32 %v235, %v322
        %v330 = vmul.f32 %v236, %v327
        %331 = vst.msk [vmem:[%s208] sm:$0xff] %vm245, %v329
        %332 = vst.msk [vmem:[%s208 + $0x8] sm:$0xff] %vm245, %v330
        %s333 = sand.u32 %s100, 1
        %s334 = scalar_lea.sflag [#allocation3], %s333
        %s335 = sand.u32 %s100, 1
        %s336 = smul.addr %s335, 16
        %s337 = scalar_lea.vmem [#allocation2], %s336
        %s338 = smul.u32 2, %s19
        %p339 = scmp.lt.s32.totalorder %s338, 7
        %s340 = scalar_select %p339, %s338, 7
        %s341 = smul.addr %s340, 8
        %s342 = scalar_lea.vmem %s4, %s341
        // Predicated region
        $region33: #{tpu_custom_call.1} parent=31 // pred_check
          %p343 = pneg %p110
        $region34: #{tpu_custom_call.1} parent=31 // pred_check_branch
          %345 = sbr.rel (%p343) target = $region36
        $region35: #{tpu_custom_call.1} parent=31 // pred_region
          %s346 = smul.u32 2, %s19
          %348 = vsyncadd %s334, 0
          %s349 = smul.addr %s346, 8
          %s350 = scalar_lea.hbm %s3, %s349
          %s351 = sshll.u32 %s337, 4
          %s352 = int_to_ptr.vmem [resolvable:$true] %s351
          %s353 = sshll.u32 %s350, 4
          %s354 = int_to_ptr.hbm [resolvable:$true] %s353
          %359 = dma.vmem_to_hbm [thread:$0]  %s352, 256, %s354, %s334, 128, 128, 8
        $region36: #{tpu_custom_call.1} parent=31 // pred_fallthru
          _
        // Predicated region
        $region37: #{tpu_custom_call.1} parent=31 // pred_check
          %p360 = pneg %p136
        $region38: #{tpu_custom_call.1} parent=31 // pred_check_branch
          %362 = sbr.rel (%p360) target = $region40
        $region39: #{tpu_custom_call.1} parent=31 // pred_region
          %s363 = smul.u32 2, %s19
        $region40: #{tpu_custom_call.1} parent=31 // pred_fallthru
          _
      $region32: #{tpu_custom_call.1} parent=5 // pred_fallthru
        _
      %p364 = scmp.le.s32.totalorder 2, %s14
      // Predicated region
      $region41: #{tpu_custom_call.1} parent=5 // pred_check
        %p365 = pneg %p364
      $region42: #{tpu_custom_call.1} parent=5 // pred_check_branch
        %367 = sbr.rel (%p365) target = $region44
      $region43: #{tpu_custom_call.1} parent=5 // pred_region
        %s368 = ssub.s32 %s14, 2
        // Predicated region
        $region45: #{tpu_custom_call.1} parent=43 // pred_check
          %p369 = pneg %p116
        $region46: #{tpu_custom_call.1} parent=43 // pred_check_branch
          %371 = sbr.rel (%p369) target = $region48
        $region47: #{tpu_custom_call.1} parent=43 // pred_region
          %s372 = sand.u32 %s101, 1
          %s373 = scalar_lea.sflag [#allocation3], %s372
          %s374 = sand.u32 %s101, 1
          %s375 = smul.addr %s374, 16
          %s376 = scalar_lea.vmem [#allocation2], %s375
          %378 = dma.done %s373, 256
        $region48: #{tpu_custom_call.1} parent=43 // pred_fallthru
          _
        // Predicated region
        $region49: #{tpu_custom_call.1} parent=43 // pred_check
          %p379 = pneg %p142
        $region50: #{tpu_custom_call.1} parent=43 // pred_check_branch
          %381 = sbr.rel (%p379) target = $region52
        $region51: #{tpu_custom_call.1} parent=43 // pred_region
          %s382 = smul.u32 2, %s20
          %p383 = scmp.lt.s32.totalorder %s382, 7
          %s384 = scalar_select %p383, %s382, 7
          %s385 = smul.addr %s384, 8
          %s386 = scalar_lea.vmem %s4, %s385
        $region52: #{tpu_custom_call.1} parent=43 // pred_fallthru
          _
      $region44: #{tpu_custom_call.1} parent=5 // pred_fallthru
        _
    $region6: #{tpu_custom_call.1} parent=1 // loop_footer
      %s18 = sadd.s32 1, %s14
    $region7: #{tpu_custom_call.1} parent=1 // loop_footer_branch
      %13 = sbr.rel target = $region3
    $region8: #{tpu_custom_call.1} parent=1 // loop_exit
      _
    %387 = vsyncpa [#allocation3], 1
    %s388 = scalar_lea.sflag [#allocation3], 1
    %389 = vsyncpa %s388, 1

</llo_original>
